<compile_context>
chip_gen: v7x
topology: tpu7x:2x2x1
jax: 0.10.0
libtpu: 0.0.40
codegen_flags: <defaults>
</compile_context>

<pallas_src>
import jax
import jax.numpy as jnp
from jax.experimental import pallas as pl
from jax.experimental.pallas import tpu as pltpu

_LANE = 128


def mlp_kernel(xT_ref, w1_ref, b1_ref, w2_ref, b2_ref, oT_ref):
    # xT: (2, TILE_B)   w1: (8, 2)   b1: (8, 1)   w2: (1, 8)   b2: (1, 1)
    xT = xT_ref[...]

    # hidden = relu(W1 @ xT + b1)        -> (8, TILE_B), lane-dense
    h = jnp.dot(w1_ref[...], xT, preferred_element_type=jnp.float32)
    h = jnp.maximum(h + b1_ref[...], 0.0)

    # out = W2 @ hidden + b2             -> (1, TILE_B), lane-dense store
    y = jnp.dot(w2_ref[...], h, preferred_element_type=jnp.float32)
    oT_ref[...] = (y + b2_ref[...]).astype(oT_ref.dtype)


def _round_up(a, m):
    return (a + m - 1) // m * m


def my_neural_net_forward(x, w1, b1, w2, b2, *, tile_b=1024):
    """Forward pass of MyNeuralNet.

    x:  (B, 2) float32          (PyTorch row-major batch)
    w1: (8, 2), b1: (8,)        (nn.Linear(2, 8) weight/bias, PyTorch layout)
    w2: (1, 8), b2: (1,)        (nn.Linear(8, 1) weight/bias, PyTorch layout)
    returns (B, 1) float32
    """
    B = x.shape[0]

    # Pad the batch to a lane-dense, tile-aligned size.  For small B this
    # collapses to a single 128-wide tile; for large B it tiles by `tile_b`.
    tile_b = max(_LANE, min(tile_b, _round_up(B, _LANE)))
    B_pad = _round_up(B, tile_b)

    # Transposed, zero-padded input: batch on the 128-lane axis.
    xT = jnp.zeros((2, B_pad), jnp.float32).at[:, :B].set(x.T.astype(jnp.float32))

    # Column-vector biases (broadcast once per grid step inside the kernel).
    b1c = b1.reshape(8, 1).astype(jnp.float32)
    b2c = b2.reshape(1, 1).astype(jnp.float32)

    yT = pl.pallas_call(
        mlp_kernel,
        out_shape=jax.ShapeDtypeStruct((1, B_pad), jnp.float32),
        grid=(B_pad // tile_b,),
        in_specs=[
            pl.BlockSpec((2, tile_b), lambda i: (0, i)),   # xT tile (lane-dense)
            pl.BlockSpec((8, 2), lambda i: (0, 0)),        # W1, resident
            pl.BlockSpec((8, 1), lambda i: (0, 0)),        # b1, resident
            pl.BlockSpec((1, 8), lambda i: (0, 0)),        # W2, resident
            pl.BlockSpec((1, 1), lambda i: (0, 0)),        # b2, resident
        ],
        out_specs=pl.BlockSpec((1, tile_b), lambda i: (0, i)),
        compiler_params=pltpu.CompilerParams(
            dimension_semantics=("parallel",),  # shards batch across TCs on v7x
        ),
    )(xT, w1.astype(jnp.float32), b1c, w2.astype(jnp.float32), b2c)

    # Undo the transpose/padding outside the kernel.
    return yT[0, :B].reshape(B, 1)


def _reference(x, w1, b1, w2, b2):
    h = jnp.maximum(x @ w1.T + b1, 0.0)
    return h @ w2.T + b2


if __name__ == "__main__":
    key = jax.random.PRNGKey(0)
    k_w1, k_b1, k_w2, k_b2, k_x = jax.random.split(key, 5)

    # PyTorch-style uniform(-1/sqrt(fan_in), +1/sqrt(fan_in)) init,
    # weights in PyTorch (out_features, in_features) layout.
    lim1 = 1.0 / jnp.sqrt(2.0)
    lim2 = 1.0 / jnp.sqrt(8.0)
    w1 = jax.random.uniform(k_w1, (8, 2), jnp.float32, -lim1, lim1)
    b1 = jax.random.uniform(k_b1, (8,), jnp.float32, -lim1, lim1)
    w2 = jax.random.uniform(k_w2, (1, 8), jnp.float32, -lim2, lim2)
    b2 = jax.random.uniform(k_b2, (1,), jnp.float32, -lim2, lim2)

    # 1) Same input data as the PyTorch script: x = [[1,2],[3,4],[5,6],[7,8]]
    x_small = jnp.array([[1, 2], [3, 4], [5, 6], [7, 8]], dtype=jnp.float32)
    out_small = jax.block_until_ready(my_neural_net_forward(x_small, w1, b1, w2, b2))
    ref_small = _reference(x_small, w1, b1, w2, b2)
    assert out_small.shape == (4, 1)
    assert jnp.allclose(out_small, ref_small, atol=1e-5), (out_small, ref_small)

    # 2) A non-tile-aligned batch with a small tile to exercise the multi-step
    #    grid + padding path (3 grid steps of 128 lanes each).
    x_big = jax.random.normal(k_x, (300, 2), jnp.float32)
    out_big = jax.block_until_ready(
        my_neural_net_forward(x_big, w1, b1, w2, b2, tile_b=128))
    ref_big = _reference(x_big, w1, b1, w2, b2)
    assert out_big.shape == (300, 1)
    assert jnp.allclose(out_big, ref_big, atol=1e-5)

    print("KERNEL_OK")
</pallas_src>

<mosaic_0001>
module attributes {stable_mosaic.version = 11 : i64} {
  func.func @mlp_kernel(%arg0: i32, %arg1: memref<2x128xf32, #tpu.memory_space<vmem>>, %arg2: memref<8x2xf32, #tpu.memory_space<vmem>>, %arg3: memref<8x1xf32, #tpu.memory_space<vmem>>, %arg4: memref<1x8xf32, #tpu.memory_space<vmem>>, %arg5: memref<1x1xf32, #tpu.memory_space<vmem>>, %arg6: memref<1x128xf32, #tpu.memory_space<vmem>>) attributes {dimension_semantics = [#tpu.dimension_semantics<parallel>], iteration_bounds = array<i64: 1>, scalar_prefetch = 0 : i64, scratch_operands = 0 : i64, tpu.core_type = #tpu.core_type<tc>, window_params = [{transform_indices = @transform_0, window_bounds = array<i64: 2, 128>}, {pipeline_mode = #tpu.pipeline_mode<synchronous>, transform_indices = @transform_1, window_bounds = array<i64: 8, 2>}, {pipeline_mode = #tpu.pipeline_mode<synchronous>, transform_indices = @transform_2, window_bounds = array<i64: 8, 1>}, {pipeline_mode = #tpu.pipeline_mode<synchronous>, transform_indices = @transform_3, window_bounds = array<i64: 1, 8>}, {pipeline_mode = #tpu.pipeline_mode<synchronous>, transform_indices = @transform_4, window_bounds = array<i64: 1, 1>}, {transform_indices = @transform_5, window_bounds = array<i64: 1, 128>}]} {
    %c0 = arith.constant 0 : index
    %c0_0 = arith.constant 0 : index
    %0 = vector.load %arg1[%c0, %c0_0] : memref<2x128xf32, #tpu.memory_space<vmem>>, vector<2x128xf32>
    %c0_1 = arith.constant 0 : index
    %c0_2 = arith.constant 0 : index
    %1 = vector.load %arg2[%c0_1, %c0_2] : memref<8x2xf32, #tpu.memory_space<vmem>>, vector<8x2xf32>
    %cst = arith.constant dense<0.000000e+00> : vector<8x128xf32>
    %2 = tpu.matmul %1, %0, %cst {dimension_numbers = #tpu.dot_dimension_numbers<[1], [0], [0], [1], [0, 0, 1, 1], [], []>} : vector<8x2xf32>, vector<2x128xf32>, vector<8x128xf32> -> vector<8x128xf32>
    %c0_3 = arith.constant 0 : index
    %c0_4 = arith.constant 0 : index
    %3 = vector.load %arg3[%c0_3, %c0_4] : memref<8x1xf32, #tpu.memory_space<vmem>>, vector<8x1xf32>
    %4 = vector.broadcast %3 : vector<8x1xf32> to vector<8x128xf32>
    %5 = arith.addf %2, %4 : vector<8x128xf32>
    %cst_5 = arith.constant 0.000000e+00 : f32
    %6 = vector.broadcast %cst_5 : f32 to vector<8x128xf32>
    %7 = arith.maximumf %5, %6 : vector<8x128xf32>
    %c0_6 = arith.constant 0 : index
    %c0_7 = arith.constant 0 : index
    %8 = vector.load %arg4[%c0_6, %c0_7] : memref<1x8xf32, #tpu.memory_space<vmem>>, vector<1x8xf32>
    %cst_8 = arith.constant dense<0.000000e+00> : vector<1x128xf32>
    %9 = tpu.matmul %8, %7, %cst_8 {dimension_numbers = #tpu.dot_dimension_numbers<[1], [0], [0], [1], [0, 0, 1, 1], [], []>} : vector<1x8xf32>, vector<8x128xf32>, vector<1x128xf32> -> vector<1x128xf32>
    %c0_9 = arith.constant 0 : index
    %c0_10 = arith.constant 0 : index
    %10 = vector.load %arg5[%c0_9, %c0_10] : memref<1x1xf32, #tpu.memory_space<vmem>>, vector<1x1xf32>
    %11 = vector.broadcast %10 : vector<1x1xf32> to vector<1x128xf32>
    %12 = arith.addf %9, %11 : vector<1x128xf32>
    %c0_11 = arith.constant 0 : index
    %c0_12 = arith.constant 0 : index
    %13 = vector.load %arg6[%c0_11, %c0_12] : memref<1x128xf32, #tpu.memory_space<vmem>>, vector<1x128xf32>
    tpu.vector_store %arg6[%c0_11, %c0_12], %12 {strides = array<i32>} : memref<1x128xf32, #tpu.memory_space<vmem>>, vector<1x128xf32>,
    return
  }
  func.func @transform_0(%arg0: i32) -> (i32, i32) {
    %c0_i32 = arith.constant 0 : i32
    %c0_i32_0 = arith.constant 0 : i32
    return %c0_i32, %arg0 : i32, i32
  }
  func.func @transform_1(%arg0: i32) -> (i32, i32) {
    %c0_i32 = arith.constant 0 : i32
    %c0_i32_0 = arith.constant 0 : i32
    %c0_i32_1 = arith.constant 0 : i32
    return %c0_i32, %c0_i32_0 : i32, i32
  }
  func.func @transform_2(%arg0: i32) -> (i32, i32) {
    %c0_i32 = arith.constant 0 : i32
    %c0_i32_0 = arith.constant 0 : i32
    %c0_i32_1 = arith.constant 0 : i32
    return %c0_i32, %c0_i32_0 : i32, i32
  }
  func.func @transform_3(%arg0: i32) -> (i32, i32) {
    %c0_i32 = arith.constant 0 : i32
    %c0_i32_0 = arith.constant 0 : i32
    %c0_i32_1 = arith.constant 0 : i32
    return %c0_i32, %c0_i32_0 : i32, i32
  }
  func.func @transform_4(%arg0: i32) -> (i32, i32) {
    %c0_i32 = arith.constant 0 : i32
    %c0_i32_0 = arith.constant 0 : i32
    %c0_i32_1 = arith.constant 0 : i32
    return %c0_i32, %c0_i32_0 : i32, i32
  }
  func.func @transform_5(%arg0: i32) -> (i32, i32) {
    %c0_i32 = arith.constant 0 : i32
    %c0_i32_0 = arith.constant 0 : i32
    return %c0_i32, %arg0 : i32, i32
  }
}

</mosaic_0001>

<llo_original>
// kernel: tpu_custom_call.1
$region0: #{tpu_custom_call.1}
  #allocation0 [shape = 'u32[]', space=smem, size = 0x4, offset = 0x4, fixed_abs, tag = 'smem constant byte address 0x4 - core index']
  #allocation1 [shape = 'u32[144,128]{1,0:T(1,128)}', space=vmem, size = 0x12000, scoped, tag = 'internal scratch']
  #allocation2 [shape = 'f32[1,1]{1,0:T(1,128)S(1)}', space=vmem, size = 0x200, scoped, tag = 'scoped memory for tpu_custom_call.1']
  %s0 = inlined_call_operand.vmem [shape: f32[2,128], index: 0, kind: input, shape index: {}]
  %s1 = inlined_call_operand.vmem [shape: f32[8,2], index: 1, kind: input, shape index: {}]
  %s2 = inlined_call_operand.vmem [shape: f32[8,1], index: 2, kind: input, shape index: {}]
  %s3 = inlined_call_operand.vmem [shape: f32[1,8], index: 3, kind: input, shape index: {}]
  %s4 = inlined_call_operand.<no memory space> [shape: f32[1,1], index: 4, kind: input, shape index: {}]
  %s5 = inlined_call_operand.hbm [shape: f32[1,128], index: 5, kind: output, shape index: {}]
  %s6 = sld [smem:[#allocation0]]
  $region30: #{tpu_custom_call.1} parent=0
    _
  %s8 = ssub.s32 1, %s6
  %s9 = scalar_select 0, %s8, %s6
  %v10 = vstv %s4
  %11 = vst [vmem:[#allocation2] sm:$0x1] %v10
  $region1: #{tpu_custom_call.1} parent=0
    #allocation3 [shape = 'u8[512]{0}', space=vmem, size = 0x400, scoped, tag = 'output window, operand 0, single buffered']
    #allocation4 [shape = 's32[1]{0}', space=sflag, size = 0x4, scoped, tag = 'scoped memory for tpu_custom_call.1']
    %12 = vsyncpa [#allocation4], 0
    // Predicated region
    $region2: #{tpu_custom_call.1} parent=1 // pred_check
      _
    $region3: #{tpu_custom_call.1} parent=1 // pred_check_branch
      %14 = sbr.rel (0) target = $region5
    $region4: #{tpu_custom_call.1} parent=1 // pred_region
      _
    $region5: #{tpu_custom_call.1} parent=1 // pred_fallthru
      _
    // Predicated region
    $region6: #{tpu_custom_call.1} parent=1 // pred_check
      _
    $region7: #{tpu_custom_call.1} parent=1 // pred_check_branch
      %16 = sbr.rel (0) target = $region9
    $region8: #{tpu_custom_call.1} parent=1 // pred_region
      _
    $region9: #{tpu_custom_call.1} parent=1 // pred_fallthru
      _
    // Predicated region
    $region10: #{tpu_custom_call.1} parent=1 // pred_check
      _
    $region11: #{tpu_custom_call.1} parent=1 // pred_check_branch
      %18 = sbr.rel (0) target = $region13
    $region12: #{tpu_custom_call.1} parent=1 // pred_region
      _
    $region13: #{tpu_custom_call.1} parent=1 // pred_fallthru
      _
    // Predicated region
    $region14: #{tpu_custom_call.1} parent=1 // pred_check
      _
    $region15: #{tpu_custom_call.1} parent=1 // pred_check_branch
      %20 = sbr.rel (0) target = $region17
    $region16: #{tpu_custom_call.1} parent=1 // pred_region
      _
    $region17: #{tpu_custom_call.1} parent=1 // pred_fallthru
      _
    // Predicated region
    $region18: #{tpu_custom_call.1} parent=1 // pred_check
      _
    $region19: #{tpu_custom_call.1} parent=1 // pred_check_branch
      %22 = sbr.rel (0) target = $region21
    $region20: #{tpu_custom_call.1} parent=1 // pred_region
      _
    $region21: #{tpu_custom_call.1} parent=1 // pred_fallthru
      _
    %v23 = vld [vmem:[%s0] sm:$0x3]
    %v24 = vld [vmem:[%s1] sm:$0xff]
    %v25 = vld [vmem:[%s2] sm:$0xff]
    %27 = vset.pattern.permute.xlu0 0
    %28 = vperm.xlu0 %27, %v25
    %v29 = vpop.permute.xlu0 %28
    %vm31 = vcmask 15360
    %v33 = vsel %vm31, %v24, 0
    %vm35 = vcmask 1041408
    %v37 = vsel %vm35, %v23, 0
    %39 = vmatprep.subr.mxu0 0.0
    %40 = vmatpush1.msra.mxu0 %v37
    %41 = vmatprep.subr.mxu0 0.0
    %42 = vmatpush1.msra.mxu0 0.0
    %43 = vmatprep.subr.mxu0 0.0
    %44 = vmatpush1.msra.mxu0 0.0
    %45 = vmatprep.subr.mxu0 0.0
    %46 = vmatpush1.msra.mxu0 0.0
    %47 = vmatprep.subr.mxu0 0.0
    %48 = vmatpush1.msra.mxu0 0.0
    %49 = vmatprep.subr.mxu0 0.0
    %50 = vmatpush1.msra.mxu0 0.0
    %51 = vmatprep.subr.mxu0 0.0
    %52 = vmatpush1.msra.mxu0 0.0
    %53 = vmatprep.subr.mxu0 0.0
    %54 = vmatpush1.msra.mxu0 0.0
    %55 = vmatprep.subr.mxu0 0.0
    %56 = vmatpush1.msra.mxu0 0.0
    %57 = vmatprep.subr.mxu0 0.0
    %58 = vmatpush1.msra.mxu0 0.0
    %59 = vmatprep.subr.mxu0 0.0
    %60 = vmatpush1.msra.mxu0 0.0
    %61 = vmatprep.subr.mxu0 0.0
    %62 = vmatpush1.msra.mxu0 0.0
    %63 = vmatprep.subr.mxu0 0.0
    %64 = vmatpush1.msra.mxu0 0.0
    %65 = vmatprep.subr.mxu0 0.0
    %66 = vmatpush1.msra.mxu0 0.0
    %67 = vmatprep.subr.mxu0 0.0
    %68 = vmatpush1.msra.mxu0 0.0
    %69 = vmatprep.subr.mxu0 0.0
    %70 = vmatpush1.msra.mxu0 0.0
    %71 = vmatprep.subr.mxu0 0.0
    %72 = vmatpush1.msra.mxu0 0.0
    %73 = vmatprep.subr.mxu0 0.0
    %74 = vmatpush1.msra.mxu0 0.0
    %75 = vmatprep.subr.mxu0 0.0
    %76 = vmatpush1.msra.mxu0 0.0
    %77 = vmatprep.subr.mxu0 0.0
    %78 = vmatpush1.msra.mxu0 0.0
    %79 = vmatprep.subr.mxu0 0.0
    %80 = vmatpush1.msra.mxu0 0.0
    %81 = vmatprep.subr.mxu0 0.0
    %82 = vmatpush1.msra.mxu0 0.0
    %83 = vmatprep.subr.mxu0 0.0
    %84 = vmatpush1.msra.mxu0 0.0
    %85 = vmatprep.subr.mxu0 0.0
    %86 = vmatpush1.msra.mxu0 0.0
    %87 = vmatprep.subr.mxu0 0.0
    %88 = vmatpush1.msra.mxu0 0.0
    %89 = vmatprep.subr.mxu0 0.0
    %90 = vmatpush1.msra.mxu0 0.0
    %91 = vmatprep.subr.mxu0 0.0
    %92 = vmatpush1.msra.mxu0 0.0
    %93 = vmatprep.subr.mxu0 0.0
    %94 = vmatpush1.msra.mxu0 0.0
    %95 = vmatprep.subr.mxu0 0.0
    %96 = vmatpush1.msra.mxu0 0.0
    %97 = vmatprep.subr.mxu0 0.0
    %98 = vmatpush1.msra.mxu0 0.0
    %99 = vmatprep.subr.mxu0 0.0
    %100 = vmatpush1.msra.mxu0 0.0
    %101 = vmatprep.subr.mxu0 0.0
    %102 = vmatpush1.msra.mxu0 0.0
    %103 = vmatprep.mubr.f32.mxu0 0.0
    %104 = vmatmul.mubr.f32.gmra.mrb[0].mxu0 %v33
    %v105 = vpop.f32.mrb[0].mxu0
    %v106 = vadd.f32 %v29, %v105
    %v107 = vpop.f32.mrb[0].mxu0
    %108 = vdwg.mxu0
    %v109 = vmax.f32 %v106, 0.0
    %v110 = vld [vmem:[%s3] sm:$0x1]
    %v111 = vld [vmem:[#allocation2] sm:$0x1]
    %113 = vset.pattern.permute.xlu0 0
    %114 = vperm.xlu0 %113, %v111
    %v115 = vpop.permute.xlu0 %114
    %v117 = vlaneseq
    %v118 = vshrl.u32 %v117, 7
    %v119 = vsub.s32 0, %v118
    %v120 = vrot.slane %v115, %v119
    %vm121 = vcmask 64512
    %v123 = vsel %vm121, %v110, 0
    %125 = vmatprep.subr.mxu0 0.0
    %126 = vmatpush1.msra.mxu0 %v109
    %127 = vmatprep.subr.mxu0 0.0
    %128 = vmatpush1.msra.mxu0 0.0
    %129 = vmatprep.subr.mxu0 0.0
    %130 = vmatpush1.msra.mxu0 0.0
    %131 = vmatprep.subr.mxu0 0.0
    %132 = vmatpush1.msra.mxu0 0.0
    %133 = vmatprep.subr.mxu0 0.0
    %134 = vmatpush1.msra.mxu0 0.0
    %135 = vmatprep.subr.mxu0 0.0
    %136 = vmatpush1.msra.mxu0 0.0
    %137 = vmatprep.subr.mxu0 0.0
    %138 = vmatpush1.msra.mxu0 0.0
    %139 = vmatprep.subr.mxu0 0.0
    %140 = vmatpush1.msra.mxu0 0.0
    %141 = vmatprep.subr.mxu0 0.0
    %142 = vmatpush1.msra.mxu0 0.0
    %143 = vmatprep.subr.mxu0 0.0
    %144 = vmatpush1.msra.mxu0 0.0
    %145 = vmatprep.subr.mxu0 0.0
    %146 = vmatpush1.msra.mxu0 0.0
    %147 = vmatprep.subr.mxu0 0.0
    %148 = vmatpush1.msra.mxu0 0.0
    %149 = vmatprep.subr.mxu0 0.0
    %150 = vmatpush1.msra.mxu0 0.0
    %151 = vmatprep.subr.mxu0 0.0
    %152 = vmatpush1.msra.mxu0 0.0
    %153 = vmatprep.subr.mxu0 0.0
    %154 = vmatpush1.msra.mxu0 0.0
    %155 = vmatprep.subr.mxu0 0.0
    %156 = vmatpush1.msra.mxu0 0.0
    %157 = vmatprep.subr.mxu0 0.0
    %158 = vmatpush1.msra.mxu0 0.0
    %159 = vmatprep.subr.mxu0 0.0
    %160 = vmatpush1.msra.mxu0 0.0
    %161 = vmatprep.subr.mxu0 0.0
    %162 = vmatpush1.msra.mxu0 0.0
    %163 = vmatprep.subr.mxu0 0.0
    %164 = vmatpush1.msra.mxu0 0.0
    %165 = vmatprep.subr.mxu0 0.0
    %166 = vmatpush1.msra.mxu0 0.0
    %167 = vmatprep.subr.mxu0 0.0
    %168 = vmatpush1.msra.mxu0 0.0
    %169 = vmatprep.subr.mxu0 0.0
    %170 = vmatpush1.msra.mxu0 0.0
    %171 = vmatprep.subr.mxu0 0.0
    %172 = vmatpush1.msra.mxu0 0.0
    %173 = vmatprep.subr.mxu0 0.0
    %174 = vmatpush1.msra.mxu0 0.0
    %175 = vmatprep.subr.mxu0 0.0
    %176 = vmatpush1.msra.mxu0 0.0
    %177 = vmatprep.subr.mxu0 0.0
    %178 = vmatpush1.msra.mxu0 0.0
    %179 = vmatprep.subr.mxu0 0.0
    %180 = vmatpush1.msra.mxu0 0.0
    %181 = vmatprep.subr.mxu0 0.0
    %182 = vmatpush1.msra.mxu0 0.0
    %183 = vmatprep.subr.mxu0 0.0
    %184 = vmatpush1.msra.mxu0 0.0
    %185 = vmatprep.subr.mxu0 0.0
    %186 = vmatpush1.msra.mxu0 0.0
    %187 = vmatprep.subr.mxu0 0.0
    %188 = vmatpush1.msra.mxu0 0.0
    %189 = vmatprep.mubr.f32.mxu0 0.0
    %190 = vmatmul.mubr.f32.gmra.mrb[0].mxu0 %v123
    %v191 = vpop.f32.mrb[0].mxu0
    %v192 = vadd.f32 %v120, %v191
    %v193 = vpop.f32.mrb[0].mxu0
    %194 = vdwg.mxu0
    %195 = vst [vmem:[#allocation3] sm:$0x1] %v192
    // Predicated region
    $region22: #{tpu_custom_call.1} parent=1 // pred_check
      _
    $region23: #{tpu_custom_call.1} parent=1 // pred_check_branch
      %197 = sbr.rel (0) target = $region25
    $region24: #{tpu_custom_call.1} parent=1 // pred_region
      %s199 = ssub.s32 16, 16
      %200 = vsyncadd [#allocation4], %s199
      %s202 = sshll.u32 [#allocation3], 4
      %s203 = int_to_ptr.vmem [resolvable:$true] %s202
      %205 = dma.vmem_to_hbm [thread:$0]  %s203, 16, %s5, [#allocation4]
    $region25: #{tpu_custom_call.1} parent=1 // pred_fallthru
      _
    // Predicated region
    $region26: #{tpu_custom_call.1} parent=1 // pred_check
      _
    $region27: #{tpu_custom_call.1} parent=1 // pred_check_branch
      %207 = sbr.rel (0) target = $region29
    $region28: #{tpu_custom_call.1} parent=1 // pred_region
      %208 = dma.done [#allocation4], 16
    $region29: #{tpu_custom_call.1} parent=1 // pred_fallthru
      _
    %209 = vsyncpa [#allocation4], 1

</llo_original>
